<compile_context>
chip_gen: v7x
topology: tpu7x:2x2x1
jax: 0.10.0
libtpu: 0.0.40
codegen_flags: <defaults>
</compile_context>

<pallas_src>
import jax
import jax.numpy as jnp
from jax.experimental import pallas as pl
from jax.experimental.pallas import tpu as pltpu

IN_F = 36
HID = 72
OUT_F = 72

# Contract the feature axis of both operands: (M, K) x (N, K) -> (M, N),
# i.e. x @ W^T with PyTorch-layout (out, in) weights, natively on the MXU.
_NT_DIMS = (((1,), (1,)), ((), ()))


def ddqn_kernel(x_ref, w1_ref, b1_ref, w2_ref, b2_ref, w3_ref, b3_ref, o_ref):
    # x_ref: (TB, 36)   w*: (out, in) PyTorch layout   b*: (1, out)
    x = x_ref[...]

    # layer1 + relu : (TB, 36) x (72, 36)^T -> (TB, 72)
    h = jax.lax.dot_general(x, w1_ref[...], _NT_DIMS,
                            preferred_element_type=jnp.float32)
    h = jnp.maximum(h + b1_ref[...], 0.0)

    # layer2 + relu : (TB, 72) x (72, 72)^T -> (TB, 72)
    h = jax.lax.dot_general(h, w2_ref[...], _NT_DIMS,
                            preferred_element_type=jnp.float32)
    h = jnp.maximum(h + b2_ref[...], 0.0)

    # layer3 + tanh : (TB, 72) x (72, 72)^T -> (TB, 72)
    h = jax.lax.dot_general(h, w3_ref[...], _NT_DIMS,
                            preferred_element_type=jnp.float32)
    o_ref[...] = jnp.tanh(h + b3_ref[...]).astype(o_ref.dtype)


def _round_up(n, m):
    return ((n + m - 1) // m) * m


def ddqn_forward(x, params, *, batch_tile=8192):
    """x: (B, 36) float32. Returns (B, 72) float32 Q-values.

    params: (w1, b1, w2, b2, w3, b3) with PyTorch layout
            w: (out_features, in_features), b: (1, out_features).
    """
    w1, b1, w2, b2, w3, b3 = params
    B = x.shape[0]

    # Batch-tile selection.  The batch sits on the sublane axis, so it only
    # needs to be a multiple of 8 (feature dims are full-extent blocks).
    #   * B < 256  : single tile, minimal padding -> lowest dispatch latency
    #                for the tiny-batch inference path.
    #   * otherwise: at least two grid steps so the "parallel" batch axis can
    #                be sharded across both v7x TensorCores; tile capped at
    #                `batch_tile` (x+out tiles stay < ~7 MiB double-buffered).
    B8 = _round_up(B, 8)
    if B8 < 256:
        TB = B8
    else:
        TB = min(batch_tile, _round_up(pl.cdiv(B8, 2), 8))
    B_pad = _round_up(B8, TB)

    if B_pad != B:
        x = jnp.pad(x, ((0, B_pad - B), (0, 0)))

    grid = (B_pad // TB,)

    out = pl.pallas_call(
        ddqn_kernel,
        out_shape=jax.ShapeDtypeStruct((B_pad, OUT_F), jnp.float32),
        grid_spec=pltpu.PrefetchScalarGridSpec(
            num_scalar_prefetch=0,
            grid=grid,
            in_specs=[
                pl.BlockSpec((TB, IN_F), lambda i: (i, 0)),    # x tile (streams)
                pl.BlockSpec((HID, IN_F), lambda i: (0, 0)),   # w1 (resident)
                pl.BlockSpec((1, HID), lambda i: (0, 0)),      # b1
                pl.BlockSpec((HID, HID), lambda i: (0, 0)),    # w2
                pl.BlockSpec((1, HID), lambda i: (0, 0)),      # b2
                pl.BlockSpec((OUT_F, HID), lambda i: (0, 0)),  # w3
                pl.BlockSpec((1, OUT_F), lambda i: (0, 0)),    # b3
            ],
            out_specs=pl.BlockSpec((TB, OUT_F), lambda i: (i, 0)),
        ),
        compiler_params=pltpu.CompilerParams(
            dimension_semantics=("parallel",),  # megacore sharding on v7x
        ),
    )(x, w1, b1, w2, b2, w3, b3)

    return out if B_pad == B else out[:B]


def init_params(key):
    """Deterministic init mirroring PyTorch nn.Linear default:
    U(-1/sqrt(fan_in), 1/sqrt(fan_in)); weights stored as (out, in),
    biases as (1, out)."""
    def linear(key, fan_in, fan_out):
        kw, kb = jax.random.split(key)
        bound = 1.0 / jnp.sqrt(float(fan_in))
        w = jax.random.uniform(kw, (fan_out, fan_in), jnp.float32, -bound, bound)
        b = jax.random.uniform(kb, (1, fan_out), jnp.float32, -bound, bound)
        return w, b

    k1, k2, k3 = jax.random.split(key, 3)
    w1, b1 = linear(k1, IN_F, HID)
    w2, b2 = linear(k2, HID, HID)
    w3, b3 = linear(k3, HID, OUT_F)
    return (w1, b1, w2, b2, w3, b3)


def ddqn_reference(x, params):
    """High-precision f32 reference (HIGHEST).  The kernel uses default MXU
    precision (single-pass bf16 inputs, f32 accumulate), so comparisons use a
    relaxed tolerance."""
    w1, b1, w2, b2, w3, b3 = params
    p = jax.lax.Precision.HIGHEST
    h = jnp.maximum(jnp.dot(x, w1.T, precision=p) + b1, 0.0)
    h = jnp.maximum(jnp.dot(h, w2.T, precision=p) + b2, 0.0)
    return jnp.tanh(jnp.dot(h, w3.T, precision=p) + b3)


if __name__ == "__main__":
    key = jax.random.PRNGKey(0)
    kp, kx1, kx2 = jax.random.split(key, 3)

    params = init_params(kp)

    # Tiny-batch (demo / inference) path: single unpadded tile, one grid step.
    batch = 8
    x = jax.random.normal(kx1, (batch, IN_F), jnp.float32)
    out = jax.block_until_ready(ddqn_forward(x, params))
    ref = ddqn_reference(x, params)
    assert out.shape == (batch, OUT_F)
    assert jnp.allclose(out, ref, atol=5e-2, rtol=5e-2), "mismatch vs reference (B=8)"

    # Larger ragged batch: exercises padding and the >=2-step parallel grid.
    batch2 = 300
    x2 = jax.random.normal(kx2, (batch2, IN_F), jnp.float32)
    out2 = jax.block_until_ready(ddqn_forward(x2, params))
    ref2 = ddqn_reference(x2, params)
    assert out2.shape == (batch2, OUT_F)
    assert jnp.allclose(out2, ref2, atol=5e-2, rtol=5e-2), "mismatch vs reference (B=300)"

    print("KERNEL_OK")
</pallas_src>

<mosaic_0001>
module attributes {stable_mosaic.version = 11 : i64} {
  func.func @ddqn_kernel(%arg0: i32, %arg1: memref<8x36xf32, #tpu.memory_space<vmem>>, %arg2: memref<72x36xf32, #tpu.memory_space<vmem>>, %arg3: memref<1x72xf32, #tpu.memory_space<vmem>>, %arg4: memref<72x72xf32, #tpu.memory_space<vmem>>, %arg5: memref<1x72xf32, #tpu.memory_space<vmem>>, %arg6: memref<72x72xf32, #tpu.memory_space<vmem>>, %arg7: memref<1x72xf32, #tpu.memory_space<vmem>>, %arg8: memref<8x72xf32, #tpu.memory_space<vmem>>) attributes {dimension_semantics = [#tpu.dimension_semantics<parallel>], iteration_bounds = array<i64: 1>, scalar_prefetch = 0 : i64, scratch_operands = 0 : i64, tpu.core_type = #tpu.core_type<tc>, window_params = [{transform_indices = @transform_0, window_bounds = array<i64: 8, 36>}, {pipeline_mode = #tpu.pipeline_mode<synchronous>, transform_indices = @transform_1, window_bounds = array<i64: 72, 36>}, {pipeline_mode = #tpu.pipeline_mode<synchronous>, transform_indices = @transform_2, window_bounds = array<i64: 1, 72>}, {pipeline_mode = #tpu.pipeline_mode<synchronous>, transform_indices = @transform_3, window_bounds = array<i64: 72, 72>}, {pipeline_mode = #tpu.pipeline_mode<synchronous>, transform_indices = @transform_4, window_bounds = array<i64: 1, 72>}, {pipeline_mode = #tpu.pipeline_mode<synchronous>, transform_indices = @transform_5, window_bounds = array<i64: 72, 72>}, {pipeline_mode = #tpu.pipeline_mode<synchronous>, transform_indices = @transform_6, window_bounds = array<i64: 1, 72>}, {transform_indices = @transform_7, window_bounds = array<i64: 8, 72>}]} {
    %c0 = arith.constant 0 : index
    %c0_0 = arith.constant 0 : index
    %0 = vector.load %arg1[%c0, %c0_0] : memref<8x36xf32, #tpu.memory_space<vmem>>, vector<8x36xf32>
    %c0_1 = arith.constant 0 : index
    %c0_2 = arith.constant 0 : index
    %1 = vector.load %arg2[%c0_1, %c0_2] : memref<72x36xf32, #tpu.memory_space<vmem>>, vector<72x36xf32>
    %cst = arith.constant dense<0.000000e+00> : vector<8x72xf32>
    %2 = tpu.matmul %0, %1, %cst {dimension_numbers = #tpu.dot_dimension_numbers<[1], [1], [0], [0], [0, 0, 1, 0], [], []>} : vector<8x36xf32>, vector<72x36xf32>, vector<8x72xf32> -> vector<8x72xf32>
    %c0_3 = arith.constant 0 : index
    %c0_4 = arith.constant 0 : index
    %3 = vector.load %arg3[%c0_3, %c0_4] : memref<1x72xf32, #tpu.memory_space<vmem>>, vector<1x72xf32>
    %4 = vector.broadcast %3 : vector<1x72xf32> to vector<8x72xf32>
    %5 = arith.addf %2, %4 : vector<8x72xf32>
    %cst_5 = arith.constant 0.000000e+00 : f32
    %6 = vector.broadcast %cst_5 : f32 to vector<8x72xf32>
    %7 = arith.maximumf %5, %6 : vector<8x72xf32>
    %c0_6 = arith.constant 0 : index
    %c0_7 = arith.constant 0 : index
    %8 = vector.load %arg4[%c0_6, %c0_7] : memref<72x72xf32, #tpu.memory_space<vmem>>, vector<72x72xf32>
    %cst_8 = arith.constant dense<0.000000e+00> : vector<8x72xf32>
    %9 = tpu.matmul %7, %8, %cst_8 {dimension_numbers = #tpu.dot_dimension_numbers<[1], [1], [0], [0], [0, 0, 1, 0], [], []>} : vector<8x72xf32>, vector<72x72xf32>, vector<8x72xf32> -> vector<8x72xf32>
    %c0_9 = arith.constant 0 : index
    %c0_10 = arith.constant 0 : index
    %10 = vector.load %arg5[%c0_9, %c0_10] : memref<1x72xf32, #tpu.memory_space<vmem>>, vector<1x72xf32>
    %11 = vector.broadcast %10 : vector<1x72xf32> to vector<8x72xf32>
    %12 = arith.addf %9, %11 : vector<8x72xf32>
    %cst_11 = arith.constant 0.000000e+00 : f32
    %13 = vector.broadcast %cst_11 : f32 to vector<8x72xf32>
    %14 = arith.maximumf %12, %13 : vector<8x72xf32>
    %c0_12 = arith.constant 0 : index
    %c0_13 = arith.constant 0 : index
    %15 = vector.load %arg6[%c0_12, %c0_13] : memref<72x72xf32, #tpu.memory_space<vmem>>, vector<72x72xf32>
    %cst_14 = arith.constant dense<0.000000e+00> : vector<8x72xf32>
    %16 = tpu.matmul %14, %15, %cst_14 {dimension_numbers = #tpu.dot_dimension_numbers<[1], [1], [0], [0], [0, 0, 1, 0], [], []>} : vector<8x72xf32>, vector<72x72xf32>, vector<8x72xf32> -> vector<8x72xf32>
    %c0_15 = arith.constant 0 : index
    %c0_16 = arith.constant 0 : index
    %17 = vector.load %arg7[%c0_15, %c0_16] : memref<1x72xf32, #tpu.memory_space<vmem>>, vector<1x72xf32>
    %18 = vector.broadcast %17 : vector<1x72xf32> to vector<8x72xf32>
    %19 = arith.addf %16, %18 : vector<8x72xf32>
    %20 = math.tanh %19 : vector<8x72xf32>
    %c0_17 = arith.constant 0 : index
    %c0_18 = arith.constant 0 : index
    %21 = vector.load %arg8[%c0_17, %c0_18] : memref<8x72xf32, #tpu.memory_space<vmem>>, vector<8x72xf32>
    tpu.vector_store %arg8[%c0_17, %c0_18], %20 {strides = array<i32>} : memref<8x72xf32, #tpu.memory_space<vmem>>, vector<8x72xf32>,
    return
  }
  func.func @transform_0(%arg0: i32) -> (i32, i32) {
    %c0_i32 = arith.constant 0 : i32
    %c0_i32_0 = arith.constant 0 : i32
    return %arg0, %c0_i32 : i32, i32
  }
  func.func @transform_1(%arg0: i32) -> (i32, i32) {
    %c0_i32 = arith.constant 0 : i32
    %c0_i32_0 = arith.constant 0 : i32
    %c0_i32_1 = arith.constant 0 : i32
    return %c0_i32, %c0_i32_0 : i32, i32
  }
  func.func @transform_2(%arg0: i32) -> (i32, i32) {
    %c0_i32 = arith.constant 0 : i32
    %c0_i32_0 = arith.constant 0 : i32
    %c0_i32_1 = arith.constant 0 : i32
    return %c0_i32, %c0_i32_0 : i32, i32
  }
  func.func @transform_3(%arg0: i32) -> (i32, i32) {
    %c0_i32 = arith.constant 0 : i32
    %c0_i32_0 = arith.constant 0 : i32
    %c0_i32_1 = arith.constant 0 : i32
    return %c0_i32, %c0_i32_0 : i32, i32
  }
  func.func @transform_4(%arg0: i32) -> (i32, i32) {
    %c0_i32 = arith.constant 0 : i32
    %c0_i32_0 = arith.constant 0 : i32
    %c0_i32_1 = arith.constant 0 : i32
    return %c0_i32, %c0_i32_0 : i32, i32
  }
  func.func @transform_5(%arg0: i32) -> (i32, i32) {
    %c0_i32 = arith.constant 0 : i32
    %c0_i32_0 = arith.constant 0 : i32
    %c0_i32_1 = arith.constant 0 : i32
    return %c0_i32, %c0_i32_0 : i32, i32
  }
  func.func @transform_6(%arg0: i32) -> (i32, i32) {
    %c0_i32 = arith.constant 0 : i32
    %c0_i32_0 = arith.constant 0 : i32
    %c0_i32_1 = arith.constant 0 : i32
    return %c0_i32, %c0_i32_0 : i32, i32
  }
  func.func @transform_7(%arg0: i32) -> (i32, i32) {
    %c0_i32 = arith.constant 0 : i32
    %c0_i32_0 = arith.constant 0 : i32
    return %arg0, %c0_i32 : i32, i32
  }
}

</mosaic_0001>

<llo_original>
// kernel: tpu_custom_call.1
$region0: #{tpu_custom_call.1}
  #allocation0 [shape = 'u32[]', space=smem, size = 0x4, offset = 0x4, fixed_abs, tag = 'smem constant byte address 0x4 - core index']
  #allocation1 [shape = 'u32[144,128]{1,0:T(1,128)}', space=vmem, size = 0x12000, scoped, tag = 'internal scratch']
  %s0 = inlined_call_operand.vmem [shape: f32[8,36], index: 0, kind: input, shape index: {}]
  %s1 = inlined_call_operand.vmem [shape: f32[72,36], index: 1, kind: input, shape index: {}]
  %s2 = inlined_call_operand.vmem [shape: f32[1,72], index: 2, kind: input, shape index: {}]
  %s3 = inlined_call_operand.vmem [shape: f32[72,72], index: 3, kind: input, shape index: {}]
  %s4 = inlined_call_operand.vmem [shape: f32[1,72], index: 4, kind: input, shape index: {}]
  %s5 = inlined_call_operand.hbm [shape: f32[72,72], index: 5, kind: input, shape index: {}]
  %s6 = inlined_call_operand.vmem [shape: f32[1,72], index: 6, kind: input, shape index: {}]
  %s7 = inlined_call_operand.hbm [shape: f32[8,72], index: 7, kind: output, shape index: {}]
  %s8 = sld [smem:[#allocation0]]
  $region42: #{tpu_custom_call.1} parent=0
    _
  %s10 = ssub.s32 1, %s8
  %s11 = scalar_select 0, %s10, %s8
  $region1: #{tpu_custom_call.1} parent=0
    #allocation2 [shape = 'u8[36864]{0}', space=vmem, size = 0x9000, scoped, tag = 'input window, operand 5, single buffered']
    #allocation3 [shape = 's32[1]{0}', space=sflag, size = 0x4, scoped, tag = 'scoped memory for tpu_custom_call.1']
    #allocation4 [shape = 's32[1]{0}', space=sflag, size = 0x4, scoped, tag = 'scoped memory for tpu_custom_call.1']
    #allocation5 [shape = 'u8[4096]{0}', space=vmem, size = 0x1000, scoped, tag = 'output window, operand 0, single buffered']
    %12 = vsyncpa [#allocation3], 0
    %13 = vsyncpa [#allocation4], 0
    // Predicated region
    $region2: #{tpu_custom_call.1} parent=1 // pred_check
      _
    $region3: #{tpu_custom_call.1} parent=1 // pred_check_branch
      %15 = sbr.rel (0) target = $region5
    $region4: #{tpu_custom_call.1} parent=1 // pred_region
      _
    $region5: #{tpu_custom_call.1} parent=1 // pred_fallthru
      _
    // Predicated region
    $region6: #{tpu_custom_call.1} parent=1 // pred_check
      _
    $region7: #{tpu_custom_call.1} parent=1 // pred_check_branch
      %17 = sbr.rel (0) target = $region9
    $region8: #{tpu_custom_call.1} parent=1 // pred_region
      _
    $region9: #{tpu_custom_call.1} parent=1 // pred_fallthru
      _
    // Predicated region
    $region10: #{tpu_custom_call.1} parent=1 // pred_check
      _
    $region11: #{tpu_custom_call.1} parent=1 // pred_check_branch
      %19 = sbr.rel (0) target = $region13
    $region12: #{tpu_custom_call.1} parent=1 // pred_region
      _
    $region13: #{tpu_custom_call.1} parent=1 // pred_fallthru
      _
    // Predicated region
    $region14: #{tpu_custom_call.1} parent=1 // pred_check
      _
    $region15: #{tpu_custom_call.1} parent=1 // pred_check_branch
      %21 = sbr.rel (0) target = $region17
    $region16: #{tpu_custom_call.1} parent=1 // pred_region
      _
    $region17: #{tpu_custom_call.1} parent=1 // pred_fallthru
      _
    // Predicated region
    $region18: #{tpu_custom_call.1} parent=1 // pred_check
      _
    $region19: #{tpu_custom_call.1} parent=1 // pred_check_branch
      %23 = sbr.rel (0) target = $region21
    $region20: #{tpu_custom_call.1} parent=1 // pred_region
      _
    $region21: #{tpu_custom_call.1} parent=1 // pred_fallthru
      _
    // Predicated region
    $region22: #{tpu_custom_call.1} parent=1 // pred_check
      _
    $region23: #{tpu_custom_call.1} parent=1 // pred_check_branch
      %25 = sbr.rel (0) target = $region25
    $region24: #{tpu_custom_call.1} parent=1 // pred_region
      %s27 = ssub.s32 1152, 1152
      %28 = vsyncadd [#allocation3], %s27
      %s29 = sshll.u32 [#allocation2], 4
      %s30 = int_to_ptr.vmem [resolvable:$true] %s29
      %35 = dma.hbm_to_vmem [thread:$0]  %s5, 1152, %s30, [#allocation3], 128, 128, 8
    $region25: #{tpu_custom_call.1} parent=1 // pred_fallthru
      _
    // Predicated region
    $region26: #{tpu_custom_call.1} parent=1 // pred_check
      _
    $region27: #{tpu_custom_call.1} parent=1 // pred_check_branch
      %37 = sbr.rel (0) target = $region29
    $region28: #{tpu_custom_call.1} parent=1 // pred_region
      _
    $region29: #{tpu_custom_call.1} parent=1 // pred_fallthru
      _
    // Predicated region
    $region30: #{tpu_custom_call.1} parent=1 // pred_check
      _
    $region31: #{tpu_custom_call.1} parent=1 // pred_check_branch
      %39 = sbr.rel (0) target = $region33
    $region32: #{tpu_custom_call.1} parent=1 // pred_region
      %40 = dma.done [#allocation3], 1152
    $region33: #{tpu_custom_call.1} parent=1 // pred_fallthru
      _
    %v41 = vld [vmem:[%s0] sm:$0xff]
    %v42 = vld [vmem:[%s1] sm:$0xff]
    %v43 = vld [vmem:[%s1 + $0x8] sm:$0xff]
    %v44 = vld [vmem:[%s1 + $0x10] sm:$0xff]
    %v45 = vld [vmem:[%s1 + $0x18] sm:$0xff]
    %v46 = vld [vmem:[%s1 + $0x20] sm:$0xff]
    %v47 = vld [vmem:[%s1 + $0x28] sm:$0xff]
    %v48 = vld [vmem:[%s1 + $0x30] sm:$0xff]
    %v49 = vld [vmem:[%s1 + $0x38] sm:$0xff]
    %v50 = vld [vmem:[%s1 + $0x40] sm:$0xff]
    %v51 = vld [vmem:[%s2] sm:$0x1]
    %v53 = vlaneseq
    %v54 = vshrl.u32 %v53, 7
    %v55 = vsub.s32 0, %v54
    %v56 = vrot.slane %v51, %v55
    %vm58 = vcmask 293888
    %v60 = vsel %vm58, %v41, 0
    %v63 = vsel %vm58, %v42, 0
    %v66 = vsel %vm58, %v43, 0
    %v69 = vsel %vm58, %v44, 0
    %v72 = vsel %vm58, %v45, 0
    %v75 = vsel %vm58, %v46, 0
    %v78 = vsel %vm58, %v47, 0
    %v81 = vsel %vm58, %v48, 0
    %v84 = vsel %vm58, %v49, 0
    %v87 = vsel %vm58, %v50, 0
    %89 = vmatprep.subr.mxu0 0.0
    %90 = vmatpush1.xpose.msra.mxu0 %v63
    %91 = vmatprep.subr.mxu0 0.0
    %92 = vmatpush1.xpose.msra.mxu0 %v66
    %93 = vmatprep.subr.mxu0 0.0
    %94 = vmatpush1.xpose.msra.mxu0 %v69
    %95 = vmatprep.subr.mxu0 0.0
    %96 = vmatpush1.xpose.msra.mxu0 %v72
    %97 = vmatprep.subr.mxu0 0.0
    %98 = vmatpush1.xpose.msra.mxu0 %v75
    %99 = vmatprep.subr.mxu0 0.0
    %100 = vmatpush1.xpose.msra.mxu0 %v78
    %101 = vmatprep.subr.mxu0 0.0
    %102 = vmatpush1.xpose.msra.mxu0 %v81
    %103 = vmatprep.subr.mxu0 0.0
    %104 = vmatpush1.xpose.msra.mxu0 %v84
    %105 = vmatprep.subr.mxu0 0.0
    %106 = vmatpush1.xpose.msra.mxu0 %v87
    %107 = vmatprep.subr.mxu0 0.0
    %108 = vmatpush1.xpose.msra.mxu0 0.0
    %109 = vmatprep.subr.mxu0 0.0
    %110 = vmatpush1.xpose.msra.mxu0 0.0
    %111 = vmatprep.subr.mxu0 0.0
    %112 = vmatpush1.xpose.msra.mxu0 0.0
    %113 = vmatprep.subr.mxu0 0.0
    %114 = vmatpush1.xpose.msra.mxu0 0.0
    %115 = vmatprep.subr.mxu0 0.0
    %116 = vmatpush1.xpose.msra.mxu0 0.0
    %117 = vmatprep.subr.mxu0 0.0
    %118 = vmatpush1.xpose.msra.mxu0 0.0
    %119 = vmatprep.subr.mxu0 0.0
    %120 = vmatpush1.xpose.msra.mxu0 0.0
    %121 = vmatprep.subr.mxu0 0.0
    %122 = vmatpush1.xpose.msra.mxu0 0.0
    %123 = vmatprep.subr.mxu0 0.0
    %124 = vmatpush1.xpose.msra.mxu0 0.0
    %125 = vmatprep.subr.mxu0 0.0
    %126 = vmatpush1.xpose.msra.mxu0 0.0
    %127 = vmatprep.subr.mxu0 0.0
    %128 = vmatpush1.xpose.msra.mxu0 0.0
    %129 = vmatprep.subr.mxu0 0.0
    %130 = vmatpush1.xpose.msra.mxu0 0.0
    %131 = vmatprep.subr.mxu0 0.0
    %132 = vmatpush1.xpose.msra.mxu0 0.0
    %133 = vmatprep.subr.mxu0 0.0
    %134 = vmatpush1.xpose.msra.mxu0 0.0
    %135 = vmatprep.subr.mxu0 0.0
    %136 = vmatpush1.xpose.msra.mxu0 0.0
    %137 = vmatprep.subr.mxu0 0.0
    %138 = vmatpush1.xpose.msra.mxu0 0.0
    %139 = vmatprep.subr.mxu0 0.0
    %140 = vmatpush1.xpose.msra.mxu0 0.0
    %141 = vmatprep.subr.mxu0 0.0
    %142 = vmatpush1.xpose.msra.mxu0 0.0
    %143 = vmatprep.subr.mxu0 0.0
    %144 = vmatpush1.xpose.msra.mxu0 0.0
    %145 = vmatprep.subr.mxu0 0.0
    %146 = vmatpush1.xpose.msra.mxu0 0.0
    %147 = vmatprep.subr.mxu0 0.0
    %148 = vmatpush1.xpose.msra.mxu0 0.0
    %149 = vmatprep.subr.mxu0 0.0
    %150 = vmatpush1.xpose.msra.mxu0 0.0
    %151 = vmatprep.subr.mxu0 0.0
    %152 = vmatpush1.xpose.msra.mxu0 0.0
    %153 = vmatprep.mubr.f32.mxu0 0.0
    %154 = vmatmul.mubr.f32.gmra.mrb[0].mxu0 %v60
    %v155 = vpop.f32.mrb[0].mxu0
    %v156 = vadd.f32 %v56, %v155
    %v157 = vpop.f32.mrb[0].mxu0
    %158 = vdwg.mxu0
    %v159 = vmax.f32 %v156, 0.0
    %v160 = vld [vmem:[%s3] sm:$0xff]
    %v161 = vld [vmem:[%s3 + $0x8] sm:$0xff]
    %v162 = vld [vmem:[%s3 + $0x10] sm:$0xff]
    %v163 = vld [vmem:[%s3 + $0x18] sm:$0xff]
    %v164 = vld [vmem:[%s3 + $0x20] sm:$0xff]
    %v165 = vld [vmem:[%s3 + $0x28] sm:$0xff]
    %v166 = vld [vmem:[%s3 + $0x30] sm:$0xff]
    %v167 = vld [vmem:[%s3 + $0x38] sm:$0xff]
    %v168 = vld [vmem:[%s3 + $0x40] sm:$0xff]
    %v169 = vld [vmem:[%s4] sm:$0x1]
    %v171 = vlaneseq
    %v172 = vshrl.u32 %v171, 7
    %v173 = vsub.s32 0, %v172
    %v174 = vrot.slane %v169, %v173
    %vm176 = vcmask 588800
    %v178 = vsel %vm176, %v159, 0
    %v181 = vsel %vm176, %v160, 0
    %v184 = vsel %vm176, %v161, 0
    %v187 = vsel %vm176, %v162, 0
    %v190 = vsel %vm176, %v163, 0
    %v193 = vsel %vm176, %v164, 0
    %v196 = vsel %vm176, %v165, 0
    %v199 = vsel %vm176, %v166, 0
    %v202 = vsel %vm176, %v167, 0
    %v205 = vsel %vm176, %v168, 0
    %207 = vmatprep.subr.mxu0 0.0
    %208 = vmatpush1.xpose.msra.mxu0 %v181
    %209 = vmatprep.subr.mxu0 0.0
    %210 = vmatpush1.xpose.msra.mxu0 %v184
    %211 = vmatprep.subr.mxu0 0.0
    %212 = vmatpush1.xpose.msra.mxu0 %v187
    %213 = vmatprep.subr.mxu0 0.0
    %214 = vmatpush1.xpose.msra.mxu0 %v190
    %215 = vmatprep.subr.mxu0 0.0
    %216 = vmatpush1.xpose.msra.mxu0 %v193
    %217 = vmatprep.subr.mxu0 0.0
    %218 = vmatpush1.xpose.msra.mxu0 %v196
    %219 = vmatprep.subr.mxu0 0.0
    %220 = vmatpush1.xpose.msra.mxu0 %v199
    %221 = vmatprep.subr.mxu0 0.0
    %222 = vmatpush1.xpose.msra.mxu0 %v202
    %223 = vmatprep.subr.mxu0 0.0
    %224 = vmatpush1.xpose.msra.mxu0 %v205
    %225 = vmatprep.subr.mxu0 0.0
    %226 = vmatpush1.xpose.msra.mxu0 0.0
    %227 = vmatprep.subr.mxu0 0.0
    %228 = vmatpush1.xpose.msra.mxu0 0.0
    %229 = vmatprep.subr.mxu0 0.0
    %230 = vmatpush1.xpose.msra.mxu0 0.0
    %231 = vmatprep.subr.mxu0 0.0
    %232 = vmatpush1.xpose.msra.mxu0 0.0
    %233 = vmatprep.subr.mxu0 0.0
    %234 = vmatpush1.xpose.msra.mxu0 0.0
    %235 = vmatprep.subr.mxu0 0.0
    %236 = vmatpush1.xpose.msra.mxu0 0.0
    %237 = vmatprep.subr.mxu0 0.0
    %238 = vmatpush1.xpose.msra.mxu0 0.0
    %239 = vmatprep.subr.mxu0 0.0
    %240 = vmatpush1.xpose.msra.mxu0 0.0
    %241 = vmatprep.subr.mxu0 0.0
    %242 = vmatpush1.xpose.msra.mxu0 0.0
    %243 = vmatprep.subr.mxu0 0.0
    %244 = vmatpush1.xpose.msra.mxu0 0.0
    %245 = vmatprep.subr.mxu0 0.0
    %246 = vmatpush1.xpose.msra.mxu0 0.0
    %247 = vmatprep.subr.mxu0 0.0
    %248 = vmatpush1.xpose.msra.mxu0 0.0
    %249 = vmatprep.subr.mxu0 0.0
    %250 = vmatpush1.xpose.msra.mxu0 0.0
    %251 = vmatprep.subr.mxu0 0.0
    %252 = vmatpush1.xpose.msra.mxu0 0.0
    %253 = vmatprep.subr.mxu0 0.0
    %254 = vmatpush1.xpose.msra.mxu0 0.0
    %255 = vmatprep.subr.mxu0 0.0
    %256 = vmatpush1.xpose.msra.mxu0 0.0
    %257 = vmatprep.subr.mxu0 0.0
    %258 = vmatpush1.xpose.msra.mxu0 0.0
    %259 = vmatprep.subr.mxu0 0.0
    %260 = vmatpush1.xpose.msra.mxu0 0.0
    %261 = vmatprep.subr.mxu0 0.0
    %262 = vmatpush1.xpose.msra.mxu0 0.0
    %263 = vmatprep.subr.mxu0 0.0
    %264 = vmatpush1.xpose.msra.mxu0 0.0
    %265 = vmatprep.subr.mxu0 0.0
    %266 = vmatpush1.xpose.msra.mxu0 0.0
    %267 = vmatprep.subr.mxu0 0.0
    %268 = vmatpush1.xpose.msra.mxu0 0.0
    %269 = vmatprep.subr.mxu0 0.0
    %270 = vmatpush1.xpose.msra.mxu0 0.0
    %271 = vmatprep.mubr.f32.mxu0 0.0
    %272 = vmatmul.mubr.f32.gmra.mrb[0].mxu0 %v178
    %v273 = vpop.f32.mrb[0].mxu0
    %v274 = vadd.f32 %v174, %v273
    %v275 = vpop.f32.mrb[0].mxu0
    %276 = vdwg.mxu0
    %v277 = vmax.f32 %v274, 0.0
    %v278 = vld [vmem:[#allocation2] sm:$0xff]
    %v279 = vld [vmem:[#allocation2 + $0x8] sm:$0xff]
    %v280 = vld [vmem:[#allocation2 + $0x10] sm:$0xff]
    %v281 = vld [vmem:[#allocation2 + $0x18] sm:$0xff]
    %v282 = vld [vmem:[#allocation2 + $0x20] sm:$0xff]
    %v283 = vld [vmem:[#allocation2 + $0x28] sm:$0xff]
    %v284 = vld [vmem:[#allocation2 + $0x30] sm:$0xff]
    %v285 = vld [vmem:[#allocation2 + $0x38] sm:$0xff]
    %v286 = vld [vmem:[#allocation2 + $0x40] sm:$0xff]
    %v287 = vld [vmem:[%s6] sm:$0x1]
    %v289 = vlaneseq
    %v290 = vshrl.u32 %v289, 7
    %v291 = vsub.s32 0, %v290
    %v292 = vrot.slane %v287, %v291
    %v295 = vsel %vm176, %v277, 0
    %v298 = vsel %vm176, %v278, 0
    %v301 = vsel %vm176, %v279, 0
    %v304 = vsel %vm176, %v280, 0
    %v307 = vsel %vm176, %v281, 0
    %v310 = vsel %vm176, %v282, 0
    %v313 = vsel %vm176, %v283, 0
    %v316 = vsel %vm176, %v284, 0
    %v319 = vsel %vm176, %v285, 0
    %v322 = vsel %vm176, %v286, 0
    %324 = vmatprep.subr.mxu0 0.0
    %325 = vmatpush1.xpose.msra.mxu0 %v298
    %326 = vmatprep.subr.mxu0 0.0
    %327 = vmatpush1.xpose.msra.mxu0 %v301
    %328 = vmatprep.subr.mxu0 0.0
    %329 = vmatpush1.xpose.msra.mxu0 %v304
    %330 = vmatprep.subr.mxu0 0.0
    %331 = vmatpush1.xpose.msra.mxu0 %v307
    %332 = vmatprep.subr.mxu0 0.0
    %333 = vmatpush1.xpose.msra.mxu0 %v310
    %334 = vmatprep.subr.mxu0 0.0
    %335 = vmatpush1.xpose.msra.mxu0 %v313
    %336 = vmatprep.subr.mxu0 0.0
    %337 = vmatpush1.xpose.msra.mxu0 %v316
    %338 = vmatprep.subr.mxu0 0.0
    %339 = vmatpush1.xpose.msra.mxu0 %v319
    %340 = vmatprep.subr.mxu0 0.0
    %341 = vmatpush1.xpose.msra.mxu0 %v322
    %342 = vmatprep.subr.mxu0 0.0
    %343 = vmatpush1.xpose.msra.mxu0 0.0
    %344 = vmatprep.subr.mxu0 0.0
    %345 = vmatpush1.xpose.msra.mxu0 0.0
    %346 = vmatprep.subr.mxu0 0.0
    %347 = vmatpush1.xpose.msra.mxu0 0.0
    %348 = vmatprep.subr.mxu0 0.0
    %349 = vmatpush1.xpose.msra.mxu0 0.0
    %350 = vmatprep.subr.mxu0 0.0
    %351 = vmatpush1.xpose.msra.mxu0 0.0
    %352 = vmatprep.subr.mxu0 0.0
    %353 = vmatpush1.xpose.msra.mxu0 0.0
    %354 = vmatprep.subr.mxu0 0.0
    %355 = vmatpush1.xpose.msra.mxu0 0.0
    %356 = vmatprep.subr.mxu0 0.0
    %357 = vmatpush1.xpose.msra.mxu0 0.0
    %358 = vmatprep.subr.mxu0 0.0
    %359 = vmatpush1.xpose.msra.mxu0 0.0
    %360 = vmatprep.subr.mxu0 0.0
    %361 = vmatpush1.xpose.msra.mxu0 0.0
    %362 = vmatprep.subr.mxu0 0.0
    %363 = vmatpush1.xpose.msra.mxu0 0.0
    %364 = vmatprep.subr.mxu0 0.0
    %365 = vmatpush1.xpose.msra.mxu0 0.0
    %366 = vmatprep.subr.mxu0 0.0
    %367 = vmatpush1.xpose.msra.mxu0 0.0
    %368 = vmatprep.subr.mxu0 0.0
    %369 = vmatpush1.xpose.msra.mxu0 0.0
    %370 = vmatprep.subr.mxu0 0.0
    %371 = vmatpush1.xpose.msra.mxu0 0.0
    %372 = vmatprep.subr.mxu0 0.0
    %373 = vmatpush1.xpose.msra.mxu0 0.0
    %374 = vmatprep.subr.mxu0 0.0
    %375 = vmatpush1.xpose.msra.mxu0 0.0
    %376 = vmatprep.subr.mxu0 0.0
    %377 = vmatpush1.xpose.msra.mxu0 0.0
    %378 = vmatprep.subr.mxu0 0.0
    %379 = vmatpush1.xpose.msra.mxu0 0.0
    %380 = vmatprep.subr.mxu0 0.0
    %381 = vmatpush1.xpose.msra.mxu0 0.0
    %382 = vmatprep.subr.mxu0 0.0
    %383 = vmatpush1.xpose.msra.mxu0 0.0
    %384 = vmatprep.subr.mxu0 0.0
    %385 = vmatpush1.xpose.msra.mxu0 0.0
    %386 = vmatprep.subr.mxu0 0.0
    %387 = vmatpush1.xpose.msra.mxu0 0.0
    %388 = vmatprep.mubr.f32.mxu0 0.0
    %389 = vmatmul.mubr.f32.gmra.mrb[0].mxu0 %v295
    %v390 = vpop.f32.mrb[0].mxu0
    %v391 = vadd.f32 %v292, %v390
    %v392 = vpop.f32.mrb[0].mxu0
    %393 = vdwg.mxu0
    %v394 = vtanh.pop %v391
    %395 = vst.msk [vmem:[#allocation5] sm:$0xff] %vm176, %v394
    // Predicated region
    $region34: #{tpu_custom_call.1} parent=1 // pred_check
      _
    $region35: #{tpu_custom_call.1} parent=1 // pred_check_branch
      %397 = sbr.rel (0) target = $region37
    $region36: #{tpu_custom_call.1} parent=1 // pred_region
      %s399 = ssub.s32 128, 128
      %400 = vsyncadd [#allocation4], %s399
      %s402 = sshll.u32 [#allocation5], 4
      %s403 = int_to_ptr.vmem [resolvable:$true] %s402
      %405 = dma.vmem_to_hbm [thread:$0]  %s403, 128, %s7, [#allocation4]
    $region37: #{tpu_custom_call.1} parent=1 // pred_fallthru
      _
    // Predicated region
    $region38: #{tpu_custom_call.1} parent=1 // pred_check
      _
    $region39: #{tpu_custom_call.1} parent=1 // pred_check_branch
      %407 = sbr.rel (0) target = $region41
    $region40: #{tpu_custom_call.1} parent=1 // pred_region
      %408 = dma.done [#allocation4], 128
    $region41: #{tpu_custom_call.1} parent=1 // pred_fallthru
      _
    %409 = vsyncpa [#allocation3], 1
    %410 = vsyncpa [#allocation4], 1

</llo_original>
